<compile_context>
chip_gen: v7x
topology: tpu7x:2x2x1
jax: 0.10.0
libtpu: 0.0.40
codegen_flags: <defaults>
</compile_context>

<pallas_src>
import functools

import jax
import jax.numpy as jnp
from jax import lax
from jax.experimental import pallas as pl
from jax.experimental.pallas import tpu as pltpu


def _pad_axis(a, axis, lo, hi, value):
    """Pad `a` with `value` along `axis` (lo before, hi after)."""
    if lo == 0 and hi == 0:
        return a
    parts = []
    if lo > 0:
        shape = list(a.shape)
        shape[axis] = lo
        parts.append(jnp.full(shape, value, a.dtype))
    parts.append(a)
    if hi > 0:
        shape = list(a.shape)
        shape[axis] = hi
        parts.append(jnp.full(shape, value, a.dtype))
    return jnp.concatenate(parts, axis=axis)


def _window_max(a, axis, kernel_size, pad, out_len, neg):
    """Same-pad window max along `axis` at full (unstrided) resolution.

    result[..., c, ...] = max(a[..., c-pad : c-pad+kernel_size, ...]) with
    out-of-range elements treated as `neg`; `out_len` positions are produced.
    Uses only contiguous slices + elementwise max (VPU work, lane/sublane
    shifts); no strided indexing.
    """
    size = a.shape[axis]
    hi = max(0, out_len + kernel_size - 1 - pad - size)
    ap = _pad_axis(a, axis, pad, hi, neg)
    acc = lax.slice_in_dim(ap, 0, out_len, axis=axis)        # first tap seeds acc
    for t in range(1, kernel_size):
        acc = jnp.maximum(acc, lax.slice_in_dim(ap, t, t + out_len, axis=axis))
    return acc


def _maxpool_kernel(sel_ref, x_ref, o_ref, *, kernel_size, stride, h_out, w_out):
    k, s = kernel_size, stride
    p = k // 2
    x = x_ref[...]                                    # (cb, H, W): W on lanes
    cb, hh, ww = x.shape
    dtype = x.dtype
    neg = jnp.finfo(dtype).min    # max-identity for finite inputs
    # TODO(synk): inputs containing +/-inf are not supported by the 0/1
    # selection matmul (0*inf = NaN); semantics match torch for finite inputs.
    wf = s * (w_out - 1) + 1                          # full-res W positions needed
    hf = s * (h_out - 1) + 1                          # full-res H positions needed

    # ---- W direction (lane axis): same-pad window max at full resolution ----
    wmax = _window_max(x, 2, k, p, wf, neg)           # (cb, H, Wf)

    # ---- stride-s column subsample: one merged 0/1 selection matmul (MXU) ----
    if s == 1:
        wsub = wmax                                   # Wf == w_out
    else:
        # TODO(synk): for very wide W a strided lane select would beat the
        # O(Wf*w_out) selection matmul; matmul kept for lowering robustness.
        wsub = jnp.dot(wmax.reshape(cb * hh, wf), sel_ref[...],
                       precision=lax.Precision.HIGHEST,
                       preferred_element_type=jnp.float32)
        wsub = wsub.astype(dtype).reshape(cb, hh, w_out)

    # ---- H direction (sublane axis): same-pad window max at full resolution ----
    hmax = _window_max(wsub, 1, k, p, hf, neg)        # (cb, Hf, w_out)

    # ---- stride-s row subsample: pure sublane selection, no MXU ----
    if s == 1:
        out = hmax
    else:
        out = jnp.concatenate(
            [hmax[:, i * s:i * s + 1, :] for i in range(h_out)], axis=1)

    o_ref[...] = out.astype(o_ref.dtype)              # (cb, h_out, w_out)


def _round_up(v, m):
    return -(-v // m) * m


def _pick_channel_block(nc, h, w, itemsize, *, vmem_budget_bytes=4 << 20, min_grid=2):
    """Channels per grid step: fill ~vmem_budget_bytes of (8,128)-padded VMEM per
    input block, while keeping at least `min_grid` grid steps so both v7x
    TensorCores get work.  cb need not divide nc (pl.cdiv grid + overhang)."""
    per_channel = _round_up(h, 8) * _round_up(w, 128) * itemsize
    cb = max(1, min(nc, vmem_budget_bytes // per_channel))
    if nc >= min_grid:
        cb = min(cb, pl.cdiv(nc, min_grid))
    return int(cb)


def maxpool2d_same_pad(x_nchw, kernel_size, stride):
    """Equivalent of nn.MaxPool2d(kernel_size, stride, padding=kernel_size // 2)."""
    if not jnp.issubdtype(x_nchw.dtype, jnp.floating):
        # TODO(synk): integer dtypes need a non-MXU lane-subsample path.
        raise NotImplementedError("maxpool2d_same_pad: floating dtypes only")
    k, s = int(kernel_size), int(stride)
    p = k // 2
    n, c, h, w = x_nchw.shape
    h_out = (h + 2 * p - k) // s + 1
    w_out = (w + 2 * p - k) // s + 1
    wf = s * (w_out - 1) + 1

    nc = n * c
    x = x_nchw.reshape(nc, h, w)                      # free reshape, no transpose
    cb = _pick_channel_block(nc, h, w, x.dtype.itemsize)
    grid = pl.cdiv(nc, cb)

    # Exact 0/1 selector picking every s-th full-resolution column; built once on
    # the host and kept VMEM-resident via a constant index_map.
    col_sel = (jnp.arange(wf, dtype=jnp.int32)[:, None]
               == s * jnp.arange(w_out, dtype=jnp.int32)[None, :]).astype(x.dtype)

    kernel = functools.partial(_maxpool_kernel, kernel_size=k, stride=s,
                               h_out=h_out, w_out=w_out)

    out = pl.pallas_call(
        kernel,
        out_shape=jax.ShapeDtypeStruct((nc, h_out, w_out), x.dtype),
        grid_spec=pltpu.PrefetchScalarGridSpec(
            num_scalar_prefetch=0,
            grid=(grid,),
            in_specs=[pl.BlockSpec((wf, w_out), lambda i: (0, 0)),
                      pl.BlockSpec((cb, h, w), lambda i: (i, 0, 0))],
            out_specs=pl.BlockSpec((cb, h_out, w_out), lambda i: (i, 0, 0)),
        ),
        compiler_params=pltpu.CompilerParams(
            dimension_semantics=("parallel",),
            vmem_limit_bytes=48 * 1024 * 1024),
    )(col_sel, x)

    # TODO(synk): when w_out < 128 a lane-dense (nc, h_out*w_out) output layout
    # would avoid masked partial stores; kept (nc, h_out, w_out) for simplicity.
    return out.reshape(n, c, h_out, w_out)


def _reference(x, kernel_size, stride):
    pad = kernel_size // 2
    return lax.reduce_window(
        x, -jnp.inf, lax.max,
        window_dimensions=(1, 1, kernel_size, kernel_size),
        window_strides=(1, 1, stride, stride),
        padding=((0, 0), (0, 0), (pad, pad), (pad, pad)))


if __name__ == "__main__":
    kernel_size, stride = 3, 2
    key = jax.random.PRNGKey(0)
    k1, k2 = jax.random.split(key)

    # Spec-sized test (NCHW).
    x = jax.random.normal(k1, (2, 4, 16, 16), dtype=jnp.float32)
    out = jax.block_until_ready(maxpool2d_same_pad(x, kernel_size, stride))
    ref = _reference(x, kernel_size, stride)
    assert out.shape == ref.shape, (out.shape, ref.shape)
    assert jnp.allclose(out, ref), "Pallas max-pool mismatch vs reference (2,4,16,16)"

    # Non-divisor N*C: exercises the pl.cdiv grid / overhanging last block path.
    x2 = jax.random.normal(k2, (1, 5, 16, 16), dtype=jnp.float32)
    out2 = jax.block_until_ready(maxpool2d_same_pad(x2, kernel_size, stride))
    ref2 = _reference(x2, kernel_size, stride)
    assert out2.shape == ref2.shape, (out2.shape, ref2.shape)
    assert jnp.allclose(out2, ref2), "Pallas max-pool mismatch vs reference (1,5,16,16)"

    print("KERNEL_OK")
</pallas_src>

<mosaic_0001>
module attributes {stable_mosaic.version = 11 : i64} {
  func.func @_maxpool_kernel(%arg0: i32, %arg1: memref<15x8xf32, #tpu.memory_space<vmem>>, %arg2: memref<4x16x16xf32, #tpu.memory_space<vmem>>, %arg3: memref<4x8x8xf32, #tpu.memory_space<vmem>>) attributes {dimension_semantics = [#tpu.dimension_semantics<parallel>], iteration_bounds = array<i64: 2>, scalar_prefetch = 0 : i64, scratch_operands = 0 : i64, tpu.core_type = #tpu.core_type<tc>, window_params = [{pipeline_mode = #tpu.pipeline_mode<synchronous>, transform_indices = @transform_0, window_bounds = array<i64: 15, 8>}, {transform_indices = @transform_1, window_bounds = array<i64: 4, 16, 16>}, {transform_indices = @transform_2, window_bounds = array<i64: 4, 8, 8>}]} {
    %c0 = arith.constant 0 : index
    %c0_0 = arith.constant 0 : index
    %c0_1 = arith.constant 0 : index
    %0 = vector.load %arg2[%c0, %c0_0, %c0_1] : memref<4x16x16xf32, #tpu.memory_space<vmem>>, vector<4x16x16xf32>
    %cst = arith.constant -3.40282347E+38 : f32
    %1 = vector.broadcast %cst : f32 to vector<4x16x1xf32>
    %2 = tpu.concatenate %1, %0 in 2 : vector<4x16x1xf32>, vector<4x16x16xf32> -> vector<4x16x17xf32>
    %3 = vector.extract_strided_slice %2 {offsets = [0, 0, 0], sizes = [4, 16, 15], strides = [1, 1, 1]} : vector<4x16x17xf32> to vector<4x16x15xf32>
    %4 = vector.extract_strided_slice %2 {offsets = [0, 0, 1], sizes = [4, 16, 15], strides = [1, 1, 1]} : vector<4x16x17xf32> to vector<4x16x15xf32>
    %5 = arith.maximumf %3, %4 : vector<4x16x15xf32>
    %6 = vector.extract_strided_slice %2 {offsets = [0, 0, 2], sizes = [4, 16, 15], strides = [1, 1, 1]} : vector<4x16x17xf32> to vector<4x16x15xf32>
    %7 = arith.maximumf %5, %6 : vector<4x16x15xf32>
    %8 = vector.shape_cast %7 : vector<4x16x15xf32> to vector<64x15xf32>
    %c0_2 = arith.constant 0 : index
    %c0_3 = arith.constant 0 : index
    %9 = vector.load %arg1[%c0_2, %c0_3] : memref<15x8xf32, #tpu.memory_space<vmem>>, vector<15x8xf32>
    %cst_4 = arith.constant dense<0.000000e+00> : vector<64x8xf32>
    %10 = tpu.matmul %8, %9, %cst_4 {dimension_numbers = #tpu.dot_dimension_numbers<[1], [0], [0], [1], [0, 0, 1, 1], [], []>, precision = #tpu.contract_precision<fp32>} : vector<64x15xf32>, vector<15x8xf32>, vector<64x8xf32> -> vector<64x8xf32>
    %11 = vector.shape_cast %10 : vector<64x8xf32> to vector<4x16x8xf32>
    %cst_5 = arith.constant -3.40282347E+38 : f32
    %12 = vector.broadcast %cst_5 : f32 to vector<4x1x8xf32>
    %13 = tpu.concatenate %12, %11 in 1 : vector<4x1x8xf32>, vector<4x16x8xf32> -> vector<4x17x8xf32>
    %14 = vector.extract_strided_slice %13 {offsets = [0, 0, 0], sizes = [4, 15, 8], strides = [1, 1, 1]} : vector<4x17x8xf32> to vector<4x15x8xf32>
    %15 = vector.extract_strided_slice %13 {offsets = [0, 1, 0], sizes = [4, 15, 8], strides = [1, 1, 1]} : vector<4x17x8xf32> to vector<4x15x8xf32>
    %16 = arith.maximumf %14, %15 : vector<4x15x8xf32>
    %17 = vector.extract_strided_slice %13 {offsets = [0, 2, 0], sizes = [4, 15, 8], strides = [1, 1, 1]} : vector<4x17x8xf32> to vector<4x15x8xf32>
    %18 = arith.maximumf %16, %17 : vector<4x15x8xf32>
    %19 = vector.extract_strided_slice %18 {offsets = [0, 0, 0], sizes = [4, 1, 8], strides = [1, 1, 1]} : vector<4x15x8xf32> to vector<4x1x8xf32>
    %20 = vector.extract_strided_slice %18 {offsets = [0, 2, 0], sizes = [4, 1, 8], strides = [1, 1, 1]} : vector<4x15x8xf32> to vector<4x1x8xf32>
    %21 = vector.extract_strided_slice %18 {offsets = [0, 4, 0], sizes = [4, 1, 8], strides = [1, 1, 1]} : vector<4x15x8xf32> to vector<4x1x8xf32>
    %22 = vector.extract_strided_slice %18 {offsets = [0, 6, 0], sizes = [4, 1, 8], strides = [1, 1, 1]} : vector<4x15x8xf32> to vector<4x1x8xf32>
    %23 = vector.extract_strided_slice %18 {offsets = [0, 8, 0], sizes = [4, 1, 8], strides = [1, 1, 1]} : vector<4x15x8xf32> to vector<4x1x8xf32>
    %24 = vector.extract_strided_slice %18 {offsets = [0, 10, 0], sizes = [4, 1, 8], strides = [1, 1, 1]} : vector<4x15x8xf32> to vector<4x1x8xf32>
    %25 = vector.extract_strided_slice %18 {offsets = [0, 12, 0], sizes = [4, 1, 8], strides = [1, 1, 1]} : vector<4x15x8xf32> to vector<4x1x8xf32>
    %26 = vector.extract_strided_slice %18 {offsets = [0, 14, 0], sizes = [4, 1, 8], strides = [1, 1, 1]} : vector<4x15x8xf32> to vector<4x1x8xf32>
    %27 = tpu.concatenate %19, %20, %21, %22, %23, %24, %25, %26 in 1 : vector<4x1x8xf32>, vector<4x1x8xf32>, vector<4x1x8xf32>, vector<4x1x8xf32>, vector<4x1x8xf32>, vector<4x1x8xf32>, vector<4x1x8xf32>, vector<4x1x8xf32> -> vector<4x8x8xf32>
    %c0_6 = arith.constant 0 : index
    %c0_7 = arith.constant 0 : index
    %c0_8 = arith.constant 0 : index
    %28 = vector.load %arg3[%c0_6, %c0_7, %c0_8] : memref<4x8x8xf32, #tpu.memory_space<vmem>>, vector<4x8x8xf32>
    tpu.vector_store %arg3[%c0_6, %c0_7, %c0_8], %27 {strides = array<i32>} : memref<4x8x8xf32, #tpu.memory_space<vmem>>, vector<4x8x8xf32>,
    return
  }
  func.func @transform_0(%arg0: i32) -> (i32, i32) {
    %c0_i32 = arith.constant 0 : i32
    %c0_i32_0 = arith.constant 0 : i32
    %c0_i32_1 = arith.constant 0 : i32
    return %c0_i32, %c0_i32_0 : i32, i32
  }
  func.func @transform_1(%arg0: i32) -> (i32, i32, i32) {
    %c0_i32 = arith.constant 0 : i32
    %c0_i32_0 = arith.constant 0 : i32
    %c0_i32_1 = arith.constant 0 : i32
    return %arg0, %c0_i32, %c0_i32_0 : i32, i32, i32
  }
  func.func @transform_2(%arg0: i32) -> (i32, i32, i32) {
    %c0_i32 = arith.constant 0 : i32
    %c0_i32_0 = arith.constant 0 : i32
    %c0_i32_1 = arith.constant 0 : i32
    return %arg0, %c0_i32, %c0_i32_0 : i32, i32, i32
  }
}

</mosaic_0001>

<llo_original>
// kernel: tpu_custom_call.1
$region0: #{tpu_custom_call.1}
  #allocation0 [shape = 'u32[]', space=smem, size = 0x4, offset = 0x4, fixed_abs, tag = 'smem constant byte address 0x4 - core index']
  #allocation1 [shape = 'u32[144,128]{1,0:T(1,128)}', space=vmem, size = 0x12000, scoped, tag = 'internal scratch']
  %s0 = inlined_call_operand.vmem [shape: f32[15,8], index: 0, kind: input, shape index: {}]
  %s1 = inlined_call_operand.hbm [shape: f32[8,16,16], index: 1, kind: input, shape index: {}]
  %s2 = inlined_call_operand.hbm [shape: f32[8,8,8], index: 2, kind: output, shape index: {}]
  %s3 = sld [smem:[#allocation0]]
  $region45: #{tpu_custom_call.1} parent=0
    _
  %s5 = ssub.s32 1, %s3
  %s6 = scalar_select 0, %s5, %s3
  $region1: #{tpu_custom_call.1} parent=0
    #allocation2 [shape = 'u8[65536]{0}', space=vmem, size = 0x10000, scoped, tag = 'input window, operand 1']
    #allocation3 [shape = 's32[2]{0}', space=sflag, size = 0x8, scoped, tag = 'scoped memory for tpu_custom_call.1']
    #allocation4 [shape = 's32[2]{0}', space=sflag, size = 0x8, scoped, tag = 'scoped memory for tpu_custom_call.1']
    #allocation5 [shape = 'u8[32768]{0}', space=vmem, size = 0x8000, scoped, tag = 'output window, operand 0']
    %7 = vsyncpa [#allocation3], 0
    %s8 = scalar_lea.sflag [#allocation3], 1
    %9 = vsyncpa %s8, 0
    %10 = vsyncpa [#allocation4], 0
    %s11 = scalar_lea.sflag [#allocation4], 1
    %12 = vsyncpa %s11, 0
    loop: start=0, step=1, limit=4
    $region2: #{tpu_custom_call.1} parent=1 // loop_pre_header
      _
    $region3: #{tpu_custom_call.1} parent=1 // loop_header
      %s14 = sphi 0, %s18
      %p15 = scmp.ge.s32.totalorder %s14, 4
      %s22 = sphi 0, %s22
      %s24 = sphi 0, %s22
      %s25 = sphi 0, %s24
      %s39 = sphi 0, %s25
      %s45 = sphi 0, %s47
      %s48 = sphi 0, %s45
      %s49 = sphi 0, %s48
      %s65 = sphi 0, %s49
      %s71 = sphi 0, %s73
      %s74 = sphi 0, %s71
      %s75 = sphi 0, %s74
      %s91 = sphi 0, %s75
    $region4: #{tpu_custom_call.1} parent=1 // loop_header_branch
      %17 = sbr.rel (%p15) target = $region8
    $region5: #{tpu_custom_call.1} parent=1 // loop_body
      %s19 = ssub.s32 %s14, 1
      %s20 = ssub.s32 %s14, 2
      %s21 = sadd.s32 %s14, 1
      %s23 = sadd.s32 %s22, 1
      %p26 = scmp.eq.s32.totalorder %s14, 1
      %p27 = scmp.ne.s32.totalorder %s22, %s24
      %p28 = scmp.eq.s32.totalorder %s14, 0
      %p29 = por %p27, %p28
      %p30 = scmp.ne.s32.totalorder %s22, %s24
      %p31 = scmp.eq.s32.totalorder %s19, 1
      %p32 = por %p30, %p31
      %p33 = scmp.ne.s32.totalorder %s24, %s25
      %p34 = scmp.eq.s32.totalorder %s19, 0
      %p35 = por %p33, %p34
      %p36 = scmp.ne.s32.totalorder %s24, %s25
      %p37 = scmp.eq.s32.totalorder %s20, 1
      %p38 = por %p36, %p37
      %p40 = scmp.ne.s32.totalorder %s25, %s39
      %p41 = scmp.eq.s32.totalorder %s20, 0
      %p42 = por %p40, %p41
      %s43 = ssub.s32 %s14, %s21
      %p44 = scmp.eq.s32.totalorder %s43, 0
      %s46 = sadd.s32 %s45, 1
      %s47 = scalar_select %p44, %s45, %s46
      %p50 = pneg %p44
      %p51 = scmp.eq.s32.totalorder %s14, 1
      %p52 = por %p50, %p51
      %p53 = scmp.ne.s32.totalorder %s45, %s48
      %p54 = scmp.eq.s32.totalorder %s14, 0
      %p55 = por %p53, %p54
      %p56 = scmp.ne.s32.totalorder %s45, %s48
      %p57 = scmp.eq.s32.totalorder %s19, 1
      %p58 = por %p56, %p57
      %p59 = scmp.ne.s32.totalorder %s48, %s49
      %p60 = scmp.eq.s32.totalorder %s19, 0
      %p61 = por %p59, %p60
      %p62 = scmp.ne.s32.totalorder %s48, %s49
      %p63 = scmp.eq.s32.totalorder %s20, 1
      %p64 = por %p62, %p63
      %p66 = scmp.ne.s32.totalorder %s49, %s65
      %p67 = scmp.eq.s32.totalorder %s20, 0
      %p68 = por %p66, %p67
      %s69 = ssub.s32 %s14, %s21
      %p70 = scmp.eq.s32.totalorder %s69, 0
      %s72 = sadd.s32 %s71, 1
      %s73 = scalar_select %p70, %s71, %s72
      %p76 = pneg %p70
      %p77 = scmp.eq.s32.totalorder %s14, 1
      %p78 = por %p76, %p77
      %p79 = scmp.ne.s32.totalorder %s71, %s74
      %p80 = scmp.eq.s32.totalorder %s14, 0
      %p81 = por %p79, %p80
      %p82 = scmp.ne.s32.totalorder %s71, %s74
      %p83 = scmp.eq.s32.totalorder %s19, 1
      %p84 = por %p82, %p83
      %p85 = scmp.ne.s32.totalorder %s74, %s75
      %p86 = scmp.eq.s32.totalorder %s19, 0
      %p87 = por %p85, %p86
      %p88 = scmp.ne.s32.totalorder %s74, %s75
      %p89 = scmp.eq.s32.totalorder %s20, 1
      %p90 = por %p88, %p89
      %p92 = scmp.ne.s32.totalorder %s75, %s91
      %p93 = scmp.eq.s32.totalorder %s20, 0
      %p94 = por %p92, %p93
      %p95 = scmp.le.s32.totalorder 1, %s14
      %p96 = scmp.lt.s32.totalorder %s14, 3
      %p97 = pnand %p95, %p96
      %p98 = pneg %p97
      // Predicated region
      $region9: #{tpu_custom_call.1} parent=5 // pred_check
        _
      $region10: #{tpu_custom_call.1} parent=5 // pred_check_branch
        %100 = sbr.rel (%p97) target = $region12
      $region11: #{tpu_custom_call.1} parent=5 // pred_region
        %s101 = ssub.s32 %s14, 1
        // Predicated region
        $region13: #{tpu_custom_call.1} parent=11 // pred_check
          %p102 = pneg %p35
        $region14: #{tpu_custom_call.1} parent=11 // pred_check_branch
          %104 = sbr.rel (%p102) target = $region16
        $region15: #{tpu_custom_call.1} parent=11 // pred_region
          _
        $region16: #{tpu_custom_call.1} parent=11 // pred_fallthru
          _
      $region12: #{tpu_custom_call.1} parent=5 // pred_fallthru
        _
      %p105 = scmp.lt.s32.totalorder %s14, 2
      // Predicated region
      $region17: #{tpu_custom_call.1} parent=5 // pred_check
        %p106 = pneg %p105
      $region18: #{tpu_custom_call.1} parent=5 // pred_check_branch
        %108 = sbr.rel (%p106) target = $region20
      $region19: #{tpu_custom_call.1} parent=5 // pred_region
        // Predicated region
        $region21: #{tpu_custom_call.1} parent=19 // pred_check
          %p109 = pneg %p55
        $region22: #{tpu_custom_call.1} parent=19 // pred_check_branch
          %111 = sbr.rel (%p109) target = $region24
        $region23: #{tpu_custom_call.1} parent=19 // pred_region
          %s112 = sand.u32 %s45, 1
          %s113 = scalar_lea.sflag [#allocation3], %s112
          %s114 = sand.u32 %s45, 1
          %s115 = smul.addr %s114, 64
          %s116 = scalar_lea.vmem [#allocation2], %s115
          %s117 = smul.u32 4, %s14
          %s119 = ssub.s32 1024, 1024
          %120 = vsyncadd %s113, %s119
          %s121 = smul.addr %s117, 2
          %s122 = smul.addr %s121, 128
          %s123 = scalar_lea.hbm %s1, %s122
          %s124 = sshll.u32 %s116, 4
          %s125 = int_to_ptr.vmem [resolvable:$true] %s124
          %130 = dma.hbm_to_vmem [thread:$0]  %s123, 1024, %s125, %s113, 128, 128, 8
        $region24: #{tpu_custom_call.1} parent=19 // pred_fallthru
          _
      $region20: #{tpu_custom_call.1} parent=5 // pred_fallthru
        _
      %p131 = scmp.le.s32.totalorder 1, %s14
      %p132 = scmp.lt.s32.totalorder %s14, 3
      %p133 = pnand %p131, %p132
      %p134 = pneg %p133
      // Predicated region
      $region25: #{tpu_custom_call.1} parent=5 // pred_check
        _
      $region26: #{tpu_custom_call.1} parent=5 // pred_check_branch
        %136 = sbr.rel (%p133) target = $region28
      $region27: #{tpu_custom_call.1} parent=5 // pred_region
        %s137 = ssub.s32 %s14, 1
        %s138 = sand.u32 %s48, 1
        %s139 = scalar_lea.sflag [#allocation3], %s138
        %s140 = sand.u32 %s48, 1
        %s141 = smul.addr %s140, 64
        %s142 = scalar_lea.vmem [#allocation2], %s141
        // Predicated region
        $region29: #{tpu_custom_call.1} parent=27 // pred_check
          %p143 = pneg %p61
        $region30: #{tpu_custom_call.1} parent=27 // pred_check_branch
          %145 = sbr.rel (%p143) target = $region32
        $region31: #{tpu_custom_call.1} parent=27 // pred_region
          %146 = dma.done %s139, 1024
        $region32: #{tpu_custom_call.1} parent=27 // pred_fallthru
          _
        %p147 = pneg %p35
        %p148 = pneg %p32
        %s149 = sand.u32 %s48, 1
        %s150 = scalar_lea.sflag [#allocation3], %s149
        %s151 = sand.u32 %s48, 1
        %s152 = smul.addr %s151, 64
        %s153 = scalar_lea.vmem [#allocation2], %s152
        %p154 = pneg %p61
        %p155 = pneg %p58
        %p156 = pneg %p87
        %p157 = pneg %p84
        %s158 = sand.u32 %s74, 1
        %s159 = scalar_lea.sflag [#allocation4], %s158
        %s160 = sand.u32 %s74, 1
        %s161 = smul.addr %s160, 32
        %s162 = scalar_lea.vmem [#allocation5], %s161
        %s163 = smul.u32 4, %s19
        %s164 = smul.u32 4, %s19
        %v165 = vld [vmem:[%s142] sm:$0xff]
        %v166 = vld [vmem:[%s142 + $0x8] sm:$0xff]
        %v167 = vld [vmem:[%s142 + $0x10] sm:$0xff]
        %v168 = vld [vmem:[%s142 + $0x18] sm:$0xff]
        %v169 = vld [vmem:[%s142 + $0x20] sm:$0xff]
        %v170 = vld [vmem:[%s142 + $0x28] sm:$0xff]
        %v171 = vld [vmem:[%s142 + $0x30] sm:$0xff]
        %v172 = vld [vmem:[%s142 + $0x38] sm:$0xff]
        %181 = vrot.lane.b32.xlu0 %v165, 1
        %v182 = vpop.permute.xlu0 %181
        %183 = vrot.lane.b32.xlu0 %v166, 1
        %v184 = vpop.permute.xlu0 %183
        %185 = vrot.lane.b32.xlu0 %v167, 1
        %v186 = vpop.permute.xlu0 %185
        %187 = vrot.lane.b32.xlu0 %v168, 1
        %v188 = vpop.permute.xlu0 %187
        %189 = vrot.lane.b32.xlu0 %v169, 1
        %v190 = vpop.permute.xlu0 %189
        %191 = vrot.lane.b32.xlu0 %v170, 1
        %v192 = vpop.permute.xlu0 %191
        %193 = vrot.lane.b32.xlu0 %v171, 1
        %v194 = vpop.permute.xlu0 %193
        %195 = vrot.lane.b32.xlu0 %v172, 1
        %v196 = vpop.permute.xlu0 %195
        %vm205 = vcmask 7168
        %v206 = vsel %vm205, -3.4028235e+38, %v182
        %v207 = vsel %vm205, -3.4028235e+38, %v184
        %v208 = vsel %vm205, -3.4028235e+38, %v186
        %v209 = vsel %vm205, -3.4028235e+38, %v188
        %v210 = vsel %vm205, -3.4028235e+38, %v190
        %v211 = vsel %vm205, -3.4028235e+38, %v192
        %v212 = vsel %vm205, -3.4028235e+38, %v194
        %v213 = vsel %vm205, -3.4028235e+38, %v196
        %222 = vrot.lane.b32.xlu0 %v206, 127
        %v223 = vpop.permute.xlu0 %222
        %224 = vrot.lane.b32.xlu0 %v207, 127
        %v225 = vpop.permute.xlu0 %224
        %226 = vrot.lane.b32.xlu0 %v208, 127
        %v227 = vpop.permute.xlu0 %226
        %228 = vrot.lane.b32.xlu0 %v209, 127
        %v229 = vpop.permute.xlu0 %228
        %230 = vrot.lane.b32.xlu0 %v210, 127
        %v231 = vpop.permute.xlu0 %230
        %232 = vrot.lane.b32.xlu0 %v211, 127
        %v233 = vpop.permute.xlu0 %232
        %234 = vrot.lane.b32.xlu0 %v212, 127
        %v235 = vpop.permute.xlu0 %234
        %236 = vrot.lane.b32.xlu0 %v213, 127
        %v237 = vpop.permute.xlu0 %236
        %v246 = vmax.f32 %v206, %v223
        %v247 = vmax.f32 %v207, %v225
        %v248 = vmax.f32 %v208, %v227
        %v249 = vmax.f32 %v209, %v229
        %v250 = vmax.f32 %v210, %v231
        %v251 = vmax.f32 %v211, %v233
        %v252 = vmax.f32 %v212, %v235
        %v253 = vmax.f32 %v213, %v237
        %254 = vrot.lane.b32.xlu0 %v206, 126
        %v255 = vpop.permute.xlu0 %254
        %256 = vrot.lane.b32.xlu0 %v207, 126
        %v257 = vpop.permute.xlu0 %256
        %258 = vrot.lane.b32.xlu0 %v208, 126
        %v259 = vpop.permute.xlu0 %258
        %260 = vrot.lane.b32.xlu0 %v209, 126
        %v261 = vpop.permute.xlu0 %260
        %262 = vrot.lane.b32.xlu0 %v210, 126
        %v263 = vpop.permute.xlu0 %262
        %264 = vrot.lane.b32.xlu0 %v211, 126
        %v265 = vpop.permute.xlu0 %264
        %266 = vrot.lane.b32.xlu0 %v212, 126
        %v267 = vpop.permute.xlu0 %266
        %268 = vrot.lane.b32.xlu0 %v213, 126
        %v269 = vpop.permute.xlu0 %268
        %v278 = vmax.f32 %v246, %v255
        %v279 = vmax.f32 %v247, %v257
        %v280 = vmax.f32 %v248, %v259
        %v281 = vmax.f32 %v249, %v261
        %v282 = vmax.f32 %v250, %v263
        %v283 = vmax.f32 %v251, %v265
        %v284 = vmax.f32 %v252, %v267
        %v285 = vmax.f32 %v253, %v269
        %v286 = vld [vmem:[%s0] sm:$0xff]
        %v287 = vld [vmem:[%s0 + $0x8] sm:$0x7f]
        %vm288 = vcmask 121856
        %v290 = vsel %vm288, %v278, 0
        %v293 = vsel %vm288, %v279, 0
        %v296 = vsel %vm288, %v280, 0
        %v299 = vsel %vm288, %v281, 0
        %v302 = vsel %vm288, %v282, 0
        %v305 = vsel %vm288, %v283, 0
        %v308 = vsel %vm288, %v284, 0
        %v311 = vsel %vm288, %v285, 0
        %vm313 = vcmask 1046528
        %v315 = vsel %vm313, %v287, 0
        %317 = vmatprep.subr.mxu0 0.0
        %v318 = vand.u32 %v286, 4294901760
        %319 = vmatpush1.msra.mxu0 %v318
        %320 = vmatprep.subr.mxu0 0.0
        %v321 = vand.u32 %v315, 4294901760
        %322 = vmatpush1.msra.mxu0 %v321
        %323 = vmatprep.subr.mxu0 0.0
        %324 = vmatpush1.msra.mxu0 0.0
        %325 = vmatprep.subr.mxu0 0.0
        %326 = vmatpush1.msra.mxu0 0.0
        %327 = vmatprep.subr.mxu0 0.0
        %328 = vmatpush1.msra.mxu0 0.0
        %329 = vmatprep.subr.mxu0 0.0
        %330 = vmatpush1.msra.mxu0 0.0
        %331 = vmatprep.subr.mxu0 0.0
        %332 = vmatpush1.msra.mxu0 0.0
        %333 = vmatprep.subr.mxu0 0.0
        %334 = vmatpush1.msra.mxu0 0.0
        %335 = vmatprep.subr.mxu0 0.0
        %336 = vmatpush1.msra.mxu0 0.0
        %337 = vmatprep.subr.mxu0 0.0
        %338 = vmatpush1.msra.mxu0 0.0
        %339 = vmatprep.subr.mxu0 0.0
        %340 = vmatpush1.msra.mxu0 0.0
        %341 = vmatprep.subr.mxu0 0.0
        %342 = vmatpush1.msra.mxu0 0.0
        %343 = vmatprep.subr.mxu0 0.0
        %344 = vmatpush1.msra.mxu0 0.0
        %345 = vmatprep.subr.mxu0 0.0
        %346 = vmatpush1.msra.mxu0 0.0
        %347 = vmatprep.subr.mxu0 0.0
        %348 = vmatpush1.msra.mxu0 0.0
        %349 = vmatprep.subr.mxu0 0.0
        %350 = vmatpush1.msra.mxu0 0.0
        %351 = vmatprep.subr.mxu0 0.0
        %352 = vmatpush1.msra.mxu0 0.0
        %353 = vmatprep.subr.mxu0 0.0
        %354 = vmatpush1.msra.mxu0 0.0
        %355 = vmatprep.subr.mxu0 0.0
        %356 = vmatpush1.msra.mxu0 0.0
        %357 = vmatprep.subr.mxu0 0.0
        %358 = vmatpush1.msra.mxu0 0.0
        %359 = vmatprep.subr.mxu0 0.0
        %360 = vmatpush1.msra.mxu0 0.0
        %361 = vmatprep.subr.mxu0 0.0
        %362 = vmatpush1.msra.mxu0 0.0
        %363 = vmatprep.subr.mxu0 0.0
        %364 = vmatpush1.msra.mxu0 0.0
        %365 = vmatprep.subr.mxu0 0.0
        %366 = vmatpush1.msra.mxu0 0.0
        %367 = vmatprep.subr.mxu0 0.0
        %368 = vmatpush1.msra.mxu0 0.0
        %369 = vmatprep.subr.mxu0 0.0
        %370 = vmatpush1.msra.mxu0 0.0
        %371 = vmatprep.subr.mxu0 0.0
        %372 = vmatpush1.msra.mxu0 0.0
        %373 = vmatprep.subr.mxu0 0.0
        %374 = vmatpush1.msra.mxu0 0.0
        %375 = vmatprep.subr.mxu0 0.0
        %376 = vmatpush1.msra.mxu0 0.0
        %377 = vmatprep.subr.mxu0 0.0
        %378 = vmatpush1.msra.mxu0 0.0
        %379 = vmatprep.subr.mxu0 0.0
        %380 = vmatpush1.msra.mxu0 0.0
        %381 = vmatprep.subr.mxu0 0.0
        %382 = vmatpush1.msra.mxu0 0.0
        %383 = vmatprep.mubr.f32.mxu0 0.0
        %v384 = vand.u32 %v290, 4294901760
        %v385 = vsub.f32 %v290, %v384
        %v386 = vand.u32 %v385, 4294901760
        %v387 = vsub.f32 %v385, %v386
        %v388 = vand.u32 %v387, 4294901760
        %389 = vmatmul.mubr.f32.gmra.mrb[0].mxu0 %v388
        %v390 = vpop.f32.mrb[0].mxu0
        %v391 = vadd.f32 0.0, %v390
        %v392 = vpop.f32.mrb[0].mxu0
        %393 = vmatprep.mubr.f32.mxu0 0.0
        %v394 = vand.u32 %v293, 4294901760
        %v395 = vsub.f32 %v293, %v394
        %v396 = vand.u32 %v395, 4294901760
        %v397 = vsub.f32 %v395, %v396
        %v398 = vand.u32 %v397, 4294901760
        %399 = vmatmul.mubr.f32.gmra.mrb[0].mxu0 %v398
        %v400 = vpop.f32.mrb[0].mxu0
        %v401 = vadd.f32 0.0, %v400
        %v402 = vpop.f32.mrb[0].mxu0
        %403 = vmatprep.mubr.f32.mxu0 0.0
        %v404 = vand.u32 %v296, 4294901760
        %v405 = vsub.f32 %v296, %v404
        %v406 = vand.u32 %v405, 4294901760
        %v407 = vsub.f32 %v405, %v406
        %v408 = vand.u32 %v407, 4294901760
        %409 = vmatmul.mubr.f32.gmra.mrb[0].mxu0 %v408
        %v410 = vpop.f32.mrb[0].mxu0
        %v411 = vadd.f32 0.0, %v410
        %v412 = vpop.f32.mrb[0].mxu0
        %413 = vmatprep.mubr.f32.mxu0 0.0
        %v414 = vand.u32 %v299, 4294901760
        %v415 = vsub.f32 %v299, %v414
        %v416 = vand.u32 %v415, 4294901760
        %v417 = vsub.f32 %v415, %v416
        %v418 = vand.u32 %v417, 4294901760
        %419 = vmatmul.mubr.f32.gmra.mrb[0].mxu0 %v418
        %v420 = vpop.f32.mrb[0].mxu0
        %v421 = vadd.f32 0.0, %v420
        %v422 = vpop.f32.mrb[0].mxu0
        %423 = vmatprep.mubr.f32.mxu0 0.0
        %v424 = vand.u32 %v302, 4294901760
        %v425 = vsub.f32 %v302, %v424
        %v426 = vand.u32 %v425, 4294901760
        %v427 = vsub.f32 %v425, %v426
        %v428 = vand.u32 %v427, 4294901760
        %429 = vmatmul.mubr.f32.gmra.mrb[0].mxu0 %v428
        %v430 = vpop.f32.mrb[0].mxu0
        %v431 = vadd.f32 0.0, %v430
        %v432 = vpop.f32.mrb[0].mxu0
        %433 = vmatprep.mubr.f32.mxu0 0.0
        %v434 = vand.u32 %v305, 4294901760
        %v435 = vsub.f32 %v305, %v434
        %v436 = vand.u32 %v435, 4294901760
        %v437 = vsub.f32 %v435, %v436
        %v438 = vand.u32 %v437, 4294901760
        %439 = vmatmul.mubr.f32.gmra.mrb[0].mxu0 %v438
        %v440 = vpop.f32.mrb[0].mxu0
        %v441 = vadd.f32 0.0, %v440
        %v442 = vpop.f32.mrb[0].mxu0
        %443 = vmatprep.mubr.f32.mxu0 0.0
        %v444 = vand.u32 %v308, 4294901760
        %v445 = vsub.f32 %v308, %v444
        %v446 = vand.u32 %v445, 4294901760
        %v447 = vsub.f32 %v445, %v446
        %v448 = vand.u32 %v447, 4294901760
        %449 = vmatmul.mubr.f32.gmra.mrb[0].mxu0 %v448
        %v450 = vpop.f32.mrb[0].mxu0
        %v451 = vadd.f32 0.0, %v450
        %v452 = vpop.f32.mrb[0].mxu0
        %453 = vmatprep.mubr.f32.mxu0 0.0
        %v454 = vand.u32 %v311, 4294901760
        %v455 = vsub.f32 %v311, %v454
        %v456 = vand.u32 %v455, 4294901760
        %v457 = vsub.f32 %v455, %v456
        %v458 = vand.u32 %v457, 4294901760
        %459 = vmatmul.mubr.f32.gmra.mrb[0].mxu0 %v458
        %v460 = vpop.f32.mrb[0].mxu0
        %v461 = vadd.f32 0.0, %v460
        %v462 = vpop.f32.mrb[0].mxu0
        %463 = vdwg.mxu0
        %464 = vmatprep.subr.mxu0 0.0
        %v465 = vand.u32 %v286, 4294901760
        %v466 = vsub.f32 %v286, %v465
        %v467 = vand.u32 %v466, 4294901760
        %v468 = vsub.f32 %v466, %v467
        %v469 = vand.u32 %v468, 4294901760
        %470 = vmatpush1.msra.mxu0 %v469
        %471 = vmatprep.subr.mxu0 0.0
        %v472 = vand.u32 %v315, 4294901760
        %v473 = vsub.f32 %v315, %v472
        %v474 = vand.u32 %v473, 4294901760
        %v475 = vsub.f32 %v473, %v474
        %v476 = vand.u32 %v475, 4294901760
        %477 = vmatpush1.msra.mxu0 %v476
        %478 = vmatprep.subr.mxu0 0.0
        %479 = vmatpush1.msra.mxu0 0.0
        %480 = vmatprep.subr.mxu0 0.0
        %481 = vmatpush1.msra.mxu0 0.0
        %482 = vmatprep.subr.mxu0 0.0
        %483 = vmatpush1.msra.mxu0 0.0
        %484 = vmatprep.subr.mxu0 0.0
        %485 = vmatpush1.msra.mxu0 0.0
        %486 = vmatprep.subr.mxu0 0.0
        %487 = vmatpush1.msra.mxu0 0.0
        %488 = vmatprep.subr.mxu0 0.0
        %489 = vmatpush1.msra.mxu0 0.0
        %490 = vmatprep.subr.mxu0 0.0
        %491 = vmatpush1.msra.mxu0 0.0
        %492 = vmatprep.subr.mxu0 0.0
        %493 = vmatpush1.msra.mxu0 0.0
        %494 = vmatprep.subr.mxu0 0.0
        %495 = vmatpush1.msra.mxu0 0.0
        %496 = vmatprep.subr.mxu0 0.0
        %497 = vmatpush1.msra.mxu0 0.0
        %498 = vmatprep.subr.mxu0 0.0
        %499 = vmatpush1.msra.mxu0 0.0
        %500 = vmatprep.subr.mxu0 0.0
        %501 = vmatpush1.msra.mxu0 0.0
        %502 = vmatprep.subr.mxu0 0.0
        %503 = vmatpush1.msra.mxu0 0.0
        %504 = vmatprep.subr.mxu0 0.0
        %505 = vmatpush1.msra.mxu0 0.0
        %506 = vmatprep.subr.mxu0 0.0
        %507 = vmatpush1.msra.mxu0 0.0
        %508 = vmatprep.subr.mxu0 0.0
        %509 = vmatpush1.msra.mxu0 0.0
        %510 = vmatprep.subr.mxu0 0.0
        %511 = vmatpush1.msra.mxu0 0.0
        %512 = vmatprep.subr.mxu0 0.0
        %513 = vmatpush1.msra.mxu0 0.0
        %514 = vmatprep.subr.mxu0 0.0
        %515 = vmatpush1.msra.mxu0 0.0
        %516 = vmatprep.subr.mxu0 0.0
        %517 = vmatpush1.msra.mxu0 0.0
        %518 = vmatprep.subr.mxu0 0.0
        %519 = vmatpush1.msra.mxu0 0.0
        %520 = vmatprep.subr.mxu0 0.0
        %521 = vmatpush1.msra.mxu0 0.0
        %522 = vmatprep.subr.mxu0 0.0
        %523 = vmatpush1.msra.mxu0 0.0
        %524 = vmatprep.subr.mxu0 0.0
        %525 = vmatpush1.msra.mxu0 0.0
        %526 = vmatprep.subr.mxu0 0.0
        %527 = vmatpush1.msra.mxu0 0.0
        %528 = vmatprep.subr.mxu0 0.0
        %529 = vmatpush1.msra.mxu0 0.0
        %530 = vmatprep.subr.mxu0 0.0
        %531 = vmatpush1.msra.mxu0 0.0
        %532 = vmatprep.subr.mxu0 0.0
        %533 = vmatpush1.msra.mxu0 0.0
        %534 = vmatprep.subr.mxu0 0.0
        %535 = vmatpush1.msra.mxu0 0.0
        %536 = vmatprep.subr.mxu0 0.0
        %537 = vmatpush1.msra.mxu0 0.0
        %538 = vmatprep.mubr.f32.mxu0 0.0
        %v539 = vand.u32 %v290, 4294901760
        %540 = vmatmul.mubr.f32.gmra.mrb[0].mxu0 %v539
        %v541 = vpop.f32.mrb[0].mxu0
        %v542 = vadd.f32 %v391, %v541
        %v543 = vpop.f32.mrb[0].mxu0
        %544 = vmatprep.mubr.f32.mxu0 0.0
        %v545 = vand.u32 %v293, 4294901760
        %546 = vmatmul.mubr.f32.gmra.mrb[0].mxu0 %v545
        %v547 = vpop.f32.mrb[0].mxu0
        %v548 = vadd.f32 %v401, %v547
        %v549 = vpop.f32.mrb[0].mxu0
        %550 = vmatprep.mubr.f32.mxu0 0.0
        %v551 = vand.u32 %v296, 4294901760
        %552 = vmatmul.mubr.f32.gmra.mrb[0].mxu0 %v551
        %v553 = vpop.f32.mrb[0].mxu0
        %v554 = vadd.f32 %v411, %v553
        %v555 = vpop.f32.mrb[0].mxu0
        %556 = vmatprep.mubr.f32.mxu0 0.0
        %v557 = vand.u32 %v299, 4294901760
        %558 = vmatmul.mubr.f32.gmra.mrb[0].mxu0 %v557
        %v559 = vpop.f32.mrb[0].mxu0
        %v560 = vadd.f32 %v421, %v559
        %v561 = vpop.f32.mrb[0].mxu0
        %562 = vmatprep.mubr.f32.mxu0 0.0
        %v563 = vand.u32 %v302, 4294901760
        %564 = vmatmul.mubr.f32.gmra.mrb[0].mxu0 %v563
        %v565 = vpop.f32.mrb[0].mxu0
        %v566 = vadd.f32 %v431, %v565
        %v567 = vpop.f32.mrb[0].mxu0
        %568 = vmatprep.mubr.f32.mxu0 0.0
        %v569 = vand.u32 %v305, 4294901760
        %570 = vmatmul.mubr.f32.gmra.mrb[0].mxu0 %v569
        %v571 = vpop.f32.mrb[0].mxu0
        %v572 = vadd.f32 %v441, %v571
        %v573 = vpop.f32.mrb[0].mxu0
        %574 = vmatprep.mubr.f32.mxu0 0.0
        %v575 = vand.u32 %v308, 4294901760
        %576 = vmatmul.mubr.f32.gmra.mrb[0].mxu0 %v575
        %v577 = vpop.f32.mrb[0].mxu0
        %v578 = vadd.f32 %v451, %v577
        %v579 = vpop.f32.mrb[0].mxu0
        %580 = vmatprep.mubr.f32.mxu0 0.0
        %v581 = vand.u32 %v311, 4294901760
        %582 = vmatmul.mubr.f32.gmra.mrb[0].mxu0 %v581
        %v583 = vpop.f32.mrb[0].mxu0
        %v584 = vadd.f32 %v461, %v583
        %v585 = vpop.f32.mrb[0].mxu0
        %586 = vdwg.mxu0
        %587 = vmatprep.subr.mxu0 0.0
        %v588 = vand.u32 %v286, 4294901760
        %v589 = vsub.f32 %v286, %v588
        %590 = vmatpush1.msra.mxu0 %v589
        %591 = vmatprep.subr.mxu0 0.0
        %v592 = vand.u32 %v315, 4294901760
        %v593 = vsub.f32 %v315, %v592
        %594 = vmatpush1.msra.mxu0 %v593
        %595 = vmatprep.subr.mxu0 0.0
        %596 = vmatpush1.msra.mxu0 0.0
        %597 = vmatprep.subr.mxu0 0.0
        %598 = vmatpush1.msra.mxu0 0.0
        %599 = vmatprep.subr.mxu0 0.0
        %600 = vmatpush1.msra.mxu0 0.0
        %601 = vmatprep.subr.mxu0 0.0
        %602 = vmatpush1.msra.mxu0 0.0
        %603 = vmatprep.subr.mxu0 0.0
        %604 = vmatpush1.msra.mxu0 0.0
        %605 = vmatprep.subr.mxu0 0.0
        %606 = vmatpush1.msra.mxu0 0.0
        %607 = vmatprep.subr.mxu0 0.0
        %608 = vmatpush1.msra.mxu0 0.0
        %609 = vmatprep.subr.mxu0 0.0
        %610 = vmatpush1.msra.mxu0 0.0
        %611 = vmatprep.subr.mxu0 0.0
        %612 = vmatpush1.msra.mxu0 0.0
        %613 = vmatprep.subr.mxu0 0.0
        %614 = vmatpush1.msra.mxu0 0.0
        %615 = vmatprep.subr.mxu0 0.0
        %616 = vmatpush1.msra.mxu0 0.0
        %617 = vmatprep.subr.mxu0 0.0
        %618 = vmatpush1.msra.mxu0 0.0
        %619 = vmatprep.subr.mxu0 0.0
        %620 = vmatpush1.msra.mxu0 0.0
        %621 = vmatprep.subr.mxu0 0.0
        %622 = vmatpush1.msra.mxu0 0.0
        %623 = vmatprep.subr.mxu0 0.0
        %624 = vmatpush1.msra.mxu0 0.0
        %625 = vmatprep.subr.mxu0 0.0
        %626 = vmatpush1.msra.mxu0 0.0
        %627 = vmatprep.subr.mxu0 0.0
        %628 = vmatpush1.msra.mxu0 0.0
        %629 = vmatprep.subr.mxu0 0.0
        %630 = vmatpush1.msra.mxu0 0.0
        %631 = vmatprep.subr.mxu0 0.0
        %632 = vmatpush1.msra.mxu0 0.0
        %633 = vmatprep.subr.mxu0 0.0
        %634 = vmatpush1.msra.mxu0 0.0
        %635 = vmatprep.subr.mxu0 0.0
        %636 = vmatpush1.msra.mxu0 0.0
        %637 = vmatprep.subr.mxu0 0.0
        %638 = vmatpush1.msra.mxu0 0.0
        %639 = vmatprep.subr.mxu0 0.0
        %640 = vmatpush1.msra.mxu0 0.0
        %641 = vmatprep.subr.mxu0 0.0
        %642 = vmatpush1.msra.mxu0 0.0
        %643 = vmatprep.subr.mxu0 0.0
        %644 = vmatpush1.msra.mxu0 0.0
        %645 = vmatprep.subr.mxu0 0.0
        %646 = vmatpush1.msra.mxu0 0.0
        %647 = vmatprep.subr.mxu0 0.0
        %648 = vmatpush1.msra.mxu0 0.0
        %649 = vmatprep.subr.mxu0 0.0
        %650 = vmatpush1.msra.mxu0 0.0
        %651 = vmatprep.subr.mxu0 0.0
        %652 = vmatpush1.msra.mxu0 0.0
        %653 = vmatprep.subr.mxu0 0.0
        %654 = vmatpush1.msra.mxu0 0.0
        %655 = vmatprep.mubr.f32.mxu0 0.0
        %v656 = vand.u32 %v290, 4294901760
        %v657 = vsub.f32 %v290, %v656
        %658 = vmatmul.mubr.f32.gmra.mrb[0].mxu0 %v657
        %v659 = vpop.f32.mrb[0].mxu0
        %v660 = vadd.f32 %v542, %v659
        %v661 = vpop.f32.mrb[0].mxu0
        %662 = vmatprep.mubr.f32.mxu0 0.0
        %v663 = vand.u32 %v293, 4294901760
        %v664 = vsub.f32 %v293, %v663
        %665 = vmatmul.mubr.f32.gmra.mrb[0].mxu0 %v664
        %v666 = vpop.f32.mrb[0].mxu0
        %v667 = vadd.f32 %v548, %v666
        %v668 = vpop.f32.mrb[0].mxu0
        %669 = vmatprep.mubr.f32.mxu0 0.0
        %v670 = vand.u32 %v296, 4294901760
        %v671 = vsub.f32 %v296, %v670
        %672 = vmatmul.mubr.f32.gmra.mrb[0].mxu0 %v671
        %v673 = vpop.f32.mrb[0].mxu0
        %v674 = vadd.f32 %v554, %v673
        %v675 = vpop.f32.mrb[0].mxu0
        %676 = vmatprep.mubr.f32.mxu0 0.0
        %v677 = vand.u32 %v299, 4294901760
        %v678 = vsub.f32 %v299, %v677
        %679 = vmatmul.mubr.f32.gmra.mrb[0].mxu0 %v678
        %v680 = vpop.f32.mrb[0].mxu0
        %v681 = vadd.f32 %v560, %v680
        %v682 = vpop.f32.mrb[0].mxu0
        %683 = vmatprep.mubr.f32.mxu0 0.0
        %v684 = vand.u32 %v302, 4294901760
        %v685 = vsub.f32 %v302, %v684
        %686 = vmatmul.mubr.f32.gmra.mrb[0].mxu0 %v685
        %v687 = vpop.f32.mrb[0].mxu0
        %v688 = vadd.f32 %v566, %v687
        %v689 = vpop.f32.mrb[0].mxu0
        %690 = vmatprep.mubr.f32.mxu0 0.0
        %v691 = vand.u32 %v305, 4294901760
        %v692 = vsub.f32 %v305, %v691
        %693 = vmatmul.mubr.f32.gmra.mrb[0].mxu0 %v692
        %v694 = vpop.f32.mrb[0].mxu0
        %v695 = vadd.f32 %v572, %v694
        %v696 = vpop.f32.mrb[0].mxu0
        %697 = vmatprep.mubr.f32.mxu0 0.0
        %v698 = vand.u32 %v308, 4294901760
        %v699 = vsub.f32 %v308, %v698
        %700 = vmatmul.mubr.f32.gmra.mrb[0].mxu0 %v699
        %v701 = vpop.f32.mrb[0].mxu0
        %v702 = vadd.f32 %v578, %v701
        %v703 = vpop.f32.mrb[0].mxu0
        %704 = vmatprep.mubr.f32.mxu0 0.0
        %v705 = vand.u32 %v311, 4294901760
        %v706 = vsub.f32 %v311, %v705
        %707 = vmatmul.mubr.f32.gmra.mrb[0].mxu0 %v706
        %v708 = vpop.f32.mrb[0].mxu0
        %v709 = vadd.f32 %v584, %v708
        %v710 = vpop.f32.mrb[0].mxu0
        %711 = vdwg.mxu0
        %712 = vmatprep.subr.mxu0 0.0
        %v713 = vand.u32 %v286, 4294901760
        %714 = vmatpush1.msra.mxu0 %v713
        %715 = vmatprep.subr.mxu0 0.0
        %v716 = vand.u32 %v315, 4294901760
        %717 = vmatpush1.msra.mxu0 %v716
        %718 = vmatprep.subr.mxu0 0.0
        %719 = vmatpush1.msra.mxu0 0.0
        %720 = vmatprep.subr.mxu0 0.0
        %721 = vmatpush1.msra.mxu0 0.0
        %722 = vmatprep.subr.mxu0 0.0
        %723 = vmatpush1.msra.mxu0 0.0
        %724 = vmatprep.subr.mxu0 0.0
        %725 = vmatpush1.msra.mxu0 0.0
        %726 = vmatprep.subr.mxu0 0.0
        %727 = vmatpush1.msra.mxu0 0.0
        %728 = vmatprep.subr.mxu0 0.0
        %729 = vmatpush1.msra.mxu0 0.0
        %730 = vmatprep.subr.mxu0 0.0
        %731 = vmatpush1.msra.mxu0 0.0
        %732 = vmatprep.subr.mxu0 0.0
        %733 = vmatpush1.msra.mxu0 0.0
        %734 = vmatprep.subr.mxu0 0.0
        %735 = vmatpush1.msra.mxu0 0.0
        %736 = vmatprep.subr.mxu0 0.0
        %737 = vmatpush1.msra.mxu0 0.0
        %738 = vmatprep.subr.mxu0 0.0
        %739 = vmatpush1.msra.mxu0 0.0
        %740 = vmatprep.subr.mxu0 0.0
        %741 = vmatpush1.msra.mxu0 0.0
        %742 = vmatprep.subr.mxu0 0.0
        %743 = vmatpush1.msra.mxu0 0.0
        %744 = vmatprep.subr.mxu0 0.0
        %745 = vmatpush1.msra.mxu0 0.0
        %746 = vmatprep.subr.mxu0 0.0
        %747 = vmatpush1.msra.mxu0 0.0
        %748 = vmatprep.subr.mxu0 0.0
        %749 = vmatpush1.msra.mxu0 0.0
        %750 = vmatprep.subr.mxu0 0.0
        %751 = vmatpush1.msra.mxu0 0.0
        %752 = vmatprep.subr.mxu0 0.0
        %753 = vmatpush1.msra.mxu0 0.0
        %754 = vmatprep.subr.mxu0 0.0
        %755 = vmatpush1.msra.mxu0 0.0
        %756 = vmatprep.subr.mxu0 0.0
        %757 = vmatpush1.msra.mxu0 0.0
        %758 = vmatprep.subr.mxu0 0.0
        %759 = vmatpush1.msra.mxu0 0.0
        %760 = vmatprep.subr.mxu0 0.0
        %761 = vmatpush1.msra.mxu0 0.0
        %762 = vmatprep.subr.mxu0 0.0
        %763 = vmatpush1.msra.mxu0 0.0
        %764 = vmatprep.subr.mxu0 0.0
        %765 = vmatpush1.msra.mxu0 0.0
        %766 = vmatprep.subr.mxu0 0.0
        %767 = vmatpush1.msra.mxu0 0.0
        %768 = vmatprep.subr.mxu0 0.0
        %769 = vmatpush1.msra.mxu0 0.0
        %770 = vmatprep.subr.mxu0 0.0
        %771 = vmatpush1.msra.mxu0 0.0
        %772 = vmatprep.subr.mxu0 0.0
        %773 = vmatpush1.msra.mxu0 0.0
        %774 = vmatprep.subr.mxu0 0.0
        %775 = vmatpush1.msra.mxu0 0.0
        %776 = vmatprep.subr.mxu0 0.0
        %777 = vmatpush1.msra.mxu0 0.0
        %778 = vmatprep.mubr.f32.mxu0 0.0
        %v779 = vand.u32 %v290, 4294901760
        %v780 = vsub.f32 %v290, %v779
        %v781 = vand.u32 %v780, 4294901760
        %782 = vmatmul.mubr.f32.gmra.mrb[0].mxu0 %v781
        %v783 = vpop.f32.mrb[0].mxu0
        %v784 = vadd.f32 %v660, %v783
        %v785 = vpop.f32.mrb[0].mxu0
        %786 = vmatprep.mubr.f32.mxu0 0.0
        %v787 = vand.u32 %v293, 4294901760
        %v788 = vsub.f32 %v293, %v787
        %v789 = vand.u32 %v788, 4294901760
        %790 = vmatmul.mubr.f32.gmra.mrb[0].mxu0 %v789
        %v791 = vpop.f32.mrb[0].mxu0
        %v792 = vadd.f32 %v667, %v791
        %v793 = vpop.f32.mrb[0].mxu0
        %794 = vmatprep.mubr.f32.mxu0 0.0
        %v795 = vand.u32 %v296, 4294901760
        %v796 = vsub.f32 %v296, %v795
        %v797 = vand.u32 %v796, 4294901760
        %798 = vmatmul.mubr.f32.gmra.mrb[0].mxu0 %v797
        %v799 = vpop.f32.mrb[0].mxu0
        %v800 = vadd.f32 %v674, %v799
        %v801 = vpop.f32.mrb[0].mxu0
        %802 = vmatprep.mubr.f32.mxu0 0.0
        %v803 = vand.u32 %v299, 4294901760
        %v804 = vsub.f32 %v299, %v803
        %v805 = vand.u32 %v804, 4294901760
        %806 = vmatmul.mubr.f32.gmra.mrb[0].mxu0 %v805
        %v807 = vpop.f32.mrb[0].mxu0
        %v808 = vadd.f32 %v681, %v807
        %v809 = vpop.f32.mrb[0].mxu0
        %810 = vmatprep.mubr.f32.mxu0 0.0
        %v811 = vand.u32 %v302, 4294901760
        %v812 = vsub.f32 %v302, %v811
        %v813 = vand.u32 %v812, 4294901760
        %814 = vmatmul.mubr.f32.gmra.mrb[0].mxu0 %v813
        %v815 = vpop.f32.mrb[0].mxu0
        %v816 = vadd.f32 %v688, %v815
        %v817 = vpop.f32.mrb[0].mxu0
        %818 = vmatprep.mubr.f32.mxu0 0.0
        %v819 = vand.u32 %v305, 4294901760
        %v820 = vsub.f32 %v305, %v819
        %v821 = vand.u32 %v820, 4294901760
        %822 = vmatmul.mubr.f32.gmra.mrb[0].mxu0 %v821
        %v823 = vpop.f32.mrb[0].mxu0
        %v824 = vadd.f32 %v695, %v823
        %v825 = vpop.f32.mrb[0].mxu0
        %826 = vmatprep.mubr.f32.mxu0 0.0
        %v827 = vand.u32 %v308, 4294901760
        %v828 = vsub.f32 %v308, %v827
        %v829 = vand.u32 %v828, 4294901760
        %830 = vmatmul.mubr.f32.gmra.mrb[0].mxu0 %v829
        %v831 = vpop.f32.mrb[0].mxu0
        %v832 = vadd.f32 %v702, %v831
        %v833 = vpop.f32.mrb[0].mxu0
        %834 = vmatprep.mubr.f32.mxu0 0.0
        %v835 = vand.u32 %v311, 4294901760
        %v836 = vsub.f32 %v311, %v835
        %v837 = vand.u32 %v836, 4294901760
        %838 = vmatmul.mubr.f32.gmra.mrb[0].mxu0 %v837
        %v839 = vpop.f32.mrb[0].mxu0
        %v840 = vadd.f32 %v709, %v839
        %v841 = vpop.f32.mrb[0].mxu0
        %842 = vdwg.mxu0
        %843 = vmatprep.subr.mxu0 0.0
        %v844 = vand.u32 %v286, 4294901760
        %v845 = vsub.f32 %v286, %v844
        %v846 = vand.u32 %v845, 4294901760
        %847 = vmatpush1.msra.mxu0 %v846
        %848 = vmatprep.subr.mxu0 0.0
        %v849 = vand.u32 %v315, 4294901760
        %v850 = vsub.f32 %v315, %v849
        %v851 = vand.u32 %v850, 4294901760
        %852 = vmatpush1.msra.mxu0 %v851
        %853 = vmatprep.subr.mxu0 0.0
        %854 = vmatpush1.msra.mxu0 0.0
        %855 = vmatprep.subr.mxu0 0.0
        %856 = vmatpush1.msra.mxu0 0.0
        %857 = vmatprep.subr.mxu0 0.0
        %858 = vmatpush1.msra.mxu0 0.0
        %859 = vmatprep.subr.mxu0 0.0
        %860 = vmatpush1.msra.mxu0 0.0
        %861 = vmatprep.subr.mxu0 0.0
        %862 = vmatpush1.msra.mxu0 0.0
        %863 = vmatprep.subr.mxu0 0.0
        %864 = vmatpush1.msra.mxu0 0.0
        %865 = vmatprep.subr.mxu0 0.0
        %866 = vmatpush1.msra.mxu0 0.0
        %867 = vmatprep.subr.mxu0 0.0
        %868 = vmatpush1.msra.mxu0 0.0
        %869 = vmatprep.subr.mxu0 0.0
        %870 = vmatpush1.msra.mxu0 0.0
        %871 = vmatprep.subr.mxu0 0.0
        %872 = vmatpush1.msra.mxu0 0.0
        %873 = vmatprep.subr.mxu0 0.0
        %874 = vmatpush1.msra.mxu0 0.0
        %875 = vmatprep.subr.mxu0 0.0
        %876 = vmatpush1.msra.mxu0 0.0
        %877 = vmatprep.subr.mxu0 0.0
        %878 = vmatpush1.msra.mxu0 0.0
        %879 = vmatprep.subr.mxu0 0.0
        %880 = vmatpush1.msra.mxu0 0.0
        %881 = vmatprep.subr.mxu0 0.0
        %882 = vmatpush1.msra.mxu0 0.0
        %883 = vmatprep.subr.mxu0 0.0
        %884 = vmatpush1.msra.mxu0 0.0
        %885 = vmatprep.subr.mxu0 0.0
        %886 = vmatpush1.msra.mxu0 0.0
        %887 = vmatprep.subr.mxu0 0.0
        %888 = vmatpush1.msra.mxu0 0.0
        %889 = vmatprep.subr.mxu0 0.0
        %890 = vmatpush1.msra.mxu0 0.0
        %891 = vmatprep.subr.mxu0 0.0
        %892 = vmatpush1.msra.mxu0 0.0
        %893 = vmatprep.subr.mxu0 0.0
        %894 = vmatpush1.msra.mxu0 0.0
        %895 = vmatprep.subr.mxu0 0.0
        %896 = vmatpush1.msra.mxu0 0.0
        %897 = vmatprep.subr.mxu0 0.0
        %898 = vmatpush1.msra.mxu0 0.0
        %899 = vmatprep.subr.mxu0 0.0
        %900 = vmatpush1.msra.mxu0 0.0
        %901 = vmatprep.subr.mxu0 0.0
        %902 = vmatpush1.msra.mxu0 0.0
        %903 = vmatprep.subr.mxu0 0.0
        %904 = vmatpush1.msra.mxu0 0.0
        %905 = vmatprep.subr.mxu0 0.0
        %906 = vmatpush1.msra.mxu0 0.0
        %907 = vmatprep.subr.mxu0 0.0
        %908 = vmatpush1.msra.mxu0 0.0
        %909 = vmatprep.subr.mxu0 0.0
        %910 = vmatpush1.msra.mxu0 0.0
        %911 = vmatprep.subr.mxu0 0.0
        %912 = vmatpush1.msra.mxu0 0.0
        %913 = vmatprep.mubr.f32.mxu0 0.0
        %v914 = vand.u32 %v290, 4294901760
        %915 = vmatmul.mubr.f32.gmra.mrb[0].mxu0 %v914
        %v916 = vpop.f32.mrb[0].mxu0
        %v917 = vadd.f32 %v784, %v916
        %v918 = vpop.f32.mrb[0].mxu0
        %919 = vmatprep.mubr.f32.mxu0 0.0
        %v920 = vand.u32 %v293, 4294901760
        %921 = vmatmul.mubr.f32.gmra.mrb[0].mxu0 %v920
        %v922 = vpop.f32.mrb[0].mxu0
        %v923 = vadd.f32 %v792, %v922
        %v924 = vpop.f32.mrb[0].mxu0
        %925 = vmatprep.mubr.f32.mxu0 0.0
        %v926 = vand.u32 %v296, 4294901760
        %927 = vmatmul.mubr.f32.gmra.mrb[0].mxu0 %v926
        %v928 = vpop.f32.mrb[0].mxu0
        %v929 = vadd.f32 %v800, %v928
        %v930 = vpop.f32.mrb[0].mxu0
        %931 = vmatprep.mubr.f32.mxu0 0.0
        %v932 = vand.u32 %v299, 4294901760
        %933 = vmatmul.mubr.f32.gmra.mrb[0].mxu0 %v932
        %v934 = vpop.f32.mrb[0].mxu0
        %v935 = vadd.f32 %v808, %v934
        %v936 = vpop.f32.mrb[0].mxu0
        %937 = vmatprep.mubr.f32.mxu0 0.0
        %v938 = vand.u32 %v302, 4294901760
        %939 = vmatmul.mubr.f32.gmra.mrb[0].mxu0 %v938
        %v940 = vpop.f32.mrb[0].mxu0
        %v941 = vadd.f32 %v816, %v940
        %v942 = vpop.f32.mrb[0].mxu0
        %943 = vmatprep.mubr.f32.mxu0 0.0
        %v944 = vand.u32 %v305, 4294901760
        %945 = vmatmul.mubr.f32.gmra.mrb[0].mxu0 %v944
        %v946 = vpop.f32.mrb[0].mxu0
        %v947 = vadd.f32 %v824, %v946
        %v948 = vpop.f32.mrb[0].mxu0
        %949 = vmatprep.mubr.f32.mxu0 0.0
        %v950 = vand.u32 %v308, 4294901760
        %951 = vmatmul.mubr.f32.gmra.mrb[0].mxu0 %v950
        %v952 = vpop.f32.mrb[0].mxu0
        %v953 = vadd.f32 %v832, %v952
        %v954 = vpop.f32.mrb[0].mxu0
        %955 = vmatprep.mubr.f32.mxu0 0.0
        %v956 = vand.u32 %v311, 4294901760
        %957 = vmatmul.mubr.f32.gmra.mrb[0].mxu0 %v956
        %v958 = vpop.f32.mrb[0].mxu0
        %v959 = vadd.f32 %v840, %v958
        %v960 = vpop.f32.mrb[0].mxu0
        %961 = vdwg.mxu0
        %962 = vmatprep.subr.mxu0 0.0
        %v963 = vand.u32 %v286, 4294901760
        %964 = vmatpush1.msra.mxu0 %v963
        %965 = vmatprep.subr.mxu0 0.0
        %v966 = vand.u32 %v315, 4294901760
        %967 = vmatpush1.msra.mxu0 %v966
        %968 = vmatprep.subr.mxu0 0.0
        %969 = vmatpush1.msra.mxu0 0.0
        %970 = vmatprep.subr.mxu0 0.0
        %971 = vmatpush1.msra.mxu0 0.0
        %972 = vmatprep.subr.mxu0 0.0
        %973 = vmatpush1.msra.mxu0 0.0
        %974 = vmatprep.subr.mxu0 0.0
        %975 = vmatpush1.msra.mxu0 0.0
        %976 = vmatprep.subr.mxu0 0.0
        %977 = vmatpush1.msra.mxu0 0.0
        %978 = vmatprep.subr.mxu0 0.0
        %979 = vmatpush1.msra.mxu0 0.0
        %980 = vmatprep.subr.mxu0 0.0
        %981 = vmatpush1.msra.mxu0 0.0
        %982 = vmatprep.subr.mxu0 0.0
        %983 = vmatpush1.msra.mxu0 0.0
        %984 = vmatprep.subr.mxu0 0.0
        %985 = vmatpush1.msra.mxu0 0.0
        %986 = vmatprep.subr.mxu0 0.0
        %987 = vmatpush1.msra.mxu0 0.0
        %988 = vmatprep.subr.mxu0 0.0
        %989 = vmatpush1.msra.mxu0 0.0
        %990 = vmatprep.subr.mxu0 0.0
        %991 = vmatpush1.msra.mxu0 0.0
        %992 = vmatprep.subr.mxu0 0.0
        %993 = vmatpush1.msra.mxu0 0.0
        %994 = vmatprep.subr.mxu0 0.0
        %995 = vmatpush1.msra.mxu0 0.0
        %996 = vmatprep.subr.mxu0 0.0
        %997 = vmatpush1.msra.mxu0 0.0
        %998 = vmatprep.subr.mxu0 0.0
        %999 = vmatpush1.msra.mxu0 0.0
        %1000 = vmatprep.subr.mxu0 0.0
        %1001 = vmatpush1.msra.mxu0 0.0
        %1002 = vmatprep.subr.mxu0 0.0
        %1003 = vmatpush1.msra.mxu0 0.0
        %1004 = vmatprep.subr.mxu0 0.0
        %1005 = vmatpush1.msra.mxu0 0.0
        %1006 = vmatprep.subr.mxu0 0.0
        %1007 = vmatpush1.msra.mxu0 0.0
        %1008 = vmatprep.subr.mxu0 0.0
        %1009 = vmatpush1.msra.mxu0 0.0
        %1010 = vmatprep.subr.mxu0 0.0
        %1011 = vmatpush1.msra.mxu0 0.0
        %1012 = vmatprep.subr.mxu0 0.0
        %1013 = vmatpush1.msra.mxu0 0.0
        %1014 = vmatprep.subr.mxu0 0.0
        %1015 = vmatpush1.msra.mxu0 0.0
        %1016 = vmatprep.subr.mxu0 0.0
        %1017 = vmatpush1.msra.mxu0 0.0
        %1018 = vmatprep.subr.mxu0 0.0
        %1019 = vmatpush1.msra.mxu0 0.0
        %1020 = vmatprep.subr.mxu0 0.0
        %1021 = vmatpush1.msra.mxu0 0.0
        %1022 = vmatprep.subr.mxu0 0.0
        %1023 = vmatpush1.msra.mxu0 0.0
        %1024 = vmatprep.subr.mxu0 0.0
        %1025 = vmatpush1.msra.mxu0 0.0
        %1026 = vmatprep.subr.mxu0 0.0
        %1027 = vmatpush1.msra.mxu0 0.0
        %1028 = vmatprep.mubr.f32.mxu0 0.0
        %v1029 = vand.u32 %v290, 4294901760
        %1030 = vmatmul.mubr.f32.gmra.mrb[0].mxu0 %v1029
        %v1031 = vpop.f32.mrb[0].mxu0
        %v1032 = vadd.f32 %v917, %v1031
        %v1033 = vpop.f32.mrb[0].mxu0
        %1034 = vmatprep.mubr.f32.mxu0 0.0
        %v1035 = vand.u32 %v293, 4294901760
        %1036 = vmatmul.mubr.f32.gmra.mrb[0].mxu0 %v1035
        %v1037 = vpop.f32.mrb[0].mxu0
        %v1038 = vadd.f32 %v923, %v1037
        %v1039 = vpop.f32.mrb[0].mxu0
        %1040 = vmatprep.mubr.f32.mxu0 0.0
        %v1041 = vand.u32 %v296, 4294901760
        %1042 = vmatmul.mubr.f32.gmra.mrb[0].mxu0 %v1041
        %v1043 = vpop.f32.mrb[0].mxu0
        %v1044 = vadd.f32 %v929, %v1043
        %v1045 = vpop.f32.mrb[0].mxu0
        %1046 = vmatprep.mubr.f32.mxu0 0.0
        %v1047 = vand.u32 %v299, 4294901760
        %1048 = vmatmul.mubr.f32.gmra.mrb[0].mxu0 %v1047
        %v1049 = vpop.f32.mrb[0].mxu0
        %v1050 = vadd.f32 %v935, %v1049
        %v1051 = vpop.f32.mrb[0].mxu0
        %1052 = vmatprep.mubr.f32.mxu0 0.0
        %v1053 = vand.u32 %v302, 4294901760
        %1054 = vmatmul.mubr.f32.gmra.mrb[0].mxu0 %v1053
        %v1055 = vpop.f32.mrb[0].mxu0
        %v1056 = vadd.f32 %v941, %v1055
        %v1057 = vpop.f32.mrb[0].mxu0
        %1058 = vmatprep.mubr.f32.mxu0 0.0
        %v1059 = vand.u32 %v305, 4294901760
        %1060 = vmatmul.mubr.f32.gmra.mrb[0].mxu0 %v1059
        %v1061 = vpop.f32.mrb[0].mxu0
        %v1062 = vadd.f32 %v947, %v1061
        %v1063 = vpop.f32.mrb[0].mxu0
        %1064 = vmatprep.mubr.f32.mxu0 0.0
        %v1065 = vand.u32 %v308, 4294901760
        %1066 = vmatmul.mubr.f32.gmra.mrb[0].mxu0 %v1065
        %v1067 = vpop.f32.mrb[0].mxu0
        %v1068 = vadd.f32 %v953, %v1067
        %v1069 = vpop.f32.mrb[0].mxu0
        %1070 = vmatprep.mubr.f32.mxu0 0.0
        %v1071 = vand.u32 %v311, 4294901760
        %1072 = vmatmul.mubr.f32.gmra.mrb[0].mxu0 %v1071
        %v1073 = vpop.f32.mrb[0].mxu0
        %v1074 = vadd.f32 %v959, %v1073
        %v1075 = vpop.f32.mrb[0].mxu0
        %1076 = vdwg.mxu0
        %vm1085 = vcmask 1040384
        %v1086 = vrot.slane %v1032, 7
        %v1087 = vrot.slane %v1038, 7
        %v1088 = vsel %vm1085, %v1086, %v1087
        %v1089 = vrot.slane %v1044, 7
        %v1090 = vrot.slane %v1050, 7
        %v1091 = vsel %vm1085, %v1089, %v1090
        %v1092 = vrot.slane %v1056, 7
        %v1093 = vrot.slane %v1062, 7
        %v1094 = vsel %vm1085, %v1092, %v1093
        %v1095 = vrot.slane %v1068, 7
        %v1096 = vrot.slane %v1074, 7
        %v1097 = vsel %vm1085, %v1095, %v1096
        %v1106 = vsel %vm1085, -3.4028235e+38, %v1086
        %v1107 = vsel %vm1085, -3.4028235e+38, %v1089
        %v1108 = vsel %vm1085, -3.4028235e+38, %v1092
        %v1109 = vsel %vm1085, -3.4028235e+38, %v1095
        %v1114 = vrot.slane %v1106, 1
        %v1115 = vrot.slane %v1088, 1
        %v1116 = vsel %vm313, %v1114, %v1115
        %v1117 = vrot.slane %v1107, 1
        %v1118 = vrot.slane %v1091, 1
        %v1119 = vsel %vm313, %v1117, %v1118
        %v1120 = vrot.slane %v1108, 1
        %v1121 = vrot.slane %v1094, 1
        %v1122 = vsel %vm313, %v1120, %v1121
        %v1123 = vrot.slane %v1109, 1
        %v1124 = vrot.slane %v1097, 1
        %v1125 = vsel %vm313, %v1123, %v1124
        %v1134 = vmax.f32 %v1106, %v1116
        %v1135 = vmax.f32 %v1088, %v1115
        %v1136 = vmax.f32 %v1107, %v1119
        %v1137 = vmax.f32 %v1091, %v1118
        %v1138 = vmax.f32 %v1108, %v1122
        %v1139 = vmax.f32 %v1094, %v1121
        %v1140 = vmax.f32 %v1109, %v1125
        %v1141 = vmax.f32 %v1097, %v1124
        %vm1142 = vcmask 1045504
        %v1143 = vrot.slane %v1106, 2
        %v1144 = vrot.slane %v1088, 2
        %v1145 = vsel %vm1142, %v1143, %v1144
        %v1146 = vrot.slane %v1087, 2
        %v1147 = vsel %vm1142, %v1144, %v1146
        %v1148 = vrot.slane %v1107, 2
        %v1149 = vrot.slane %v1091, 2
        %v1150 = vsel %vm1142, %v1148, %v1149
        %v1151 = vrot.slane %v1090, 2
        %v1152 = vsel %vm1142, %v1149, %v1151
        %v1153 = vrot.slane %v1108, 2
        %v1154 = vrot.slane %v1094, 2
        %v1155 = vsel %vm1142, %v1153, %v1154
        %v1156 = vrot.slane %v1093, 2
        %v1157 = vsel %vm1142, %v1154, %v1156
        %v1158 = vrot.slane %v1109, 2
        %v1159 = vrot.slane %v1097, 2
        %v1160 = vsel %vm1142, %v1158, %v1159
        %v1161 = vrot.slane %v1096, 2
        %v1162 = vsel %vm1142, %v1159, %v1161
        %v1171 = vmax.f32 %v1134, %v1145
        %v1172 = vmax.f32 %v1135, %v1147
        %v1173 = vmax.f32 %v1136, %v1150
        %v1174 = vmax.f32 %v1137, %v1152
        %v1175 = vmax.f32 %v1138, %v1155
        %v1176 = vmax.f32 %v1139, %v1157
        %v1177 = vmax.f32 %v1140, %v1160
        %v1178 = vmax.f32 %v1141, %v1162
        %v1183 = vrot.slane %v1171, 1
        %v1184 = vrot.slane %v1173, 1
        %v1185 = vrot.slane %v1175, 1
        %v1186 = vrot.slane %v1177, 1
        %v1191 = vrot.slane %v1171, 2
        %v1192 = vrot.slane %v1173, 2
        %v1193 = vrot.slane %v1175, 2
        %v1194 = vrot.slane %v1177, 2
        %v1199 = vrot.slane %v1171, 3
        %v1200 = vrot.slane %v1173, 3
        %v1201 = vrot.slane %v1175, 3
        %v1202 = vrot.slane %v1177, 3
        %v1211 = vrot.slane %v1172, 4
        %v1212 = vrot.slane %v1174, 4
        %v1213 = vrot.slane %v1176, 4
        %v1214 = vrot.slane %v1178, 4
        %v1219 = vrot.slane %v1172, 5
        %v1220 = vrot.slane %v1174, 5
        %v1221 = vrot.slane %v1176, 5
        %v1222 = vrot.slane %v1178, 5
        %v1227 = vrot.slane %v1172, 6
        %v1228 = vrot.slane %v1174, 6
        %v1229 = vrot.slane %v1176, 6
        %v1230 = vrot.slane %v1178, 6
        %v1235 = vrot.slane %v1172, 7
        %v1236 = vrot.slane %v1174, 7
        %v1237 = vrot.slane %v1176, 7
        %v1238 = vrot.slane %v1178, 7
        %v1243 = vsel %vm1085, %v1171, %v1183
        %v1244 = vsel %vm1085, %v1173, %v1184
        %v1245 = vsel %vm1085, %v1175, %v1185
        %v1246 = vsel %vm1085, %v1177, %v1186
        %vm1247 = vcmask 1041408
        %v1248 = vsel %vm1247, %v1243, %v1191
        %v1249 = vsel %vm1247, %v1244, %v1192
        %v1250 = vsel %vm1247, %v1245, %v1193
        %v1251 = vsel %vm1247, %v1246, %v1194
        %vm1252 = vcmask 1042432
        %v1253 = vsel %vm1252, %v1248, %v1199
        %v1254 = vsel %vm1252, %v1249, %v1200
        %v1255 = vsel %vm1252, %v1250, %v1201
        %v1256 = vsel %vm1252, %v1251, %v1202
        %vm1257 = vcmask 1043456
        %v1258 = vsel %vm1257, %v1253, %v1211
        %v1259 = vsel %vm1257, %v1254, %v1212
        %v1260 = vsel %vm1257, %v1255, %v1213
        %v1261 = vsel %vm1257, %v1256, %v1214
        %vm1262 = vcmask 1044480
        %v1263 = vsel %vm1262, %v1258, %v1219
        %v1264 = vsel %vm1262, %v1259, %v1220
        %v1265 = vsel %vm1262, %v1260, %v1221
        %v1266 = vsel %vm1262, %v1261, %v1222
        %v1267 = vsel %vm1142, %v1263, %v1227
        %v1268 = vsel %vm1142, %v1264, %v1228
        %v1269 = vsel %vm1142, %v1265, %v1229
        %v1270 = vsel %vm1142, %v1266, %v1230
        %v1271 = vsel %vm313, %v1267, %v1235
        %v1272 = vsel %vm313, %v1268, %v1236
        %v1273 = vsel %vm313, %v1269, %v1237
        %v1274 = vsel %vm313, %v1270, %v1238
        %vm1275 = vcmask 64512
        %1276 = vst.msk [vmem:[%s162] sm:$0xff] %vm1275, %v1271
        %1277 = vst.msk [vmem:[%s162 + $0x8] sm:$0xff] %vm1275, %v1272
        %1278 = vst.msk [vmem:[%s162 + $0x10] sm:$0xff] %vm1275, %v1273
        %1279 = vst.msk [vmem:[%s162 + $0x18] sm:$0xff] %vm1275, %v1274
        %s1280 = sand.u32 %s74, 1
        %s1281 = scalar_lea.sflag [#allocation4], %s1280
        %s1282 = sand.u32 %s74, 1
        %s1283 = smul.addr %s1282, 32
        %s1284 = scalar_lea.vmem [#allocation5], %s1283
        // Predicated region
        $region33: #{tpu_custom_call.1} parent=27 // pred_check
          %p1285 = pneg %p84
        $region34: #{tpu_custom_call.1} parent=27 // pred_check_branch
          %1287 = sbr.rel (%p1285) target = $region36
        $region35: #{tpu_custom_call.1} parent=27 // pred_region
          %s1288 = smul.u32 4, %s19
          %s1290 = ssub.s32 512, 512
          %1291 = vsyncadd %s1281, %s1290
          %s1292 = smul.addr %s1288, 128
          %s1293 = scalar_lea.hbm %s2, %s1292
          %s1294 = sshll.u32 %s1284, 4
          %s1295 = int_to_ptr.vmem [resolvable:$true] %s1294
          %1300 = dma.vmem_to_hbm [thread:$0]  %s1295, 512, %s1293, %s1281, 128, 128, 8
        $region36: #{tpu_custom_call.1} parent=27 // pred_fallthru
          _
      $region28: #{tpu_custom_call.1} parent=5 // pred_fallthru
        _
      %p1301 = scmp.le.s32.totalorder 2, %s14
      // Predicated region
      $region37: #{tpu_custom_call.1} parent=5 // pred_check
        %p1302 = pneg %p1301
      $region38: #{tpu_custom_call.1} parent=5 // pred_check_branch
        %1304 = sbr.rel (%p1302) target = $region40
      $region39: #{tpu_custom_call.1} parent=5 // pred_region
        %s1305 = ssub.s32 %s14, 2
        // Predicated region
        $region41: #{tpu_custom_call.1} parent=39 // pred_check
          %p1306 = pneg %p90
        $region42: #{tpu_custom_call.1} parent=39 // pred_check_branch
          %1308 = sbr.rel (%p1306) target = $region44
        $region43: #{tpu_custom_call.1} parent=39 // pred_region
          %s1309 = sand.u32 %s75, 1
          %s1310 = scalar_lea.sflag [#allocation4], %s1309
          %s1311 = sand.u32 %s75, 1
          %s1312 = smul.addr %s1311, 32
          %s1313 = scalar_lea.vmem [#allocation5], %s1312
          %1314 = dma.done %s1310, 512
        $region44: #{tpu_custom_call.1} parent=39 // pred_fallthru
          _
      $region40: #{tpu_custom_call.1} parent=5 // pred_fallthru
        _
    $region6: #{tpu_custom_call.1} parent=1 // loop_footer
      %s18 = sadd.s32 1, %s14
    $region7: #{tpu_custom_call.1} parent=1 // loop_footer_branch
      %13 = sbr.rel target = $region3
    $region8: #{tpu_custom_call.1} parent=1 // loop_exit
      _
    %1315 = vsyncpa [#allocation3], 1
    %s1316 = scalar_lea.sflag [#allocation3], 1
    %1317 = vsyncpa %s1316, 1
    %1318 = vsyncpa [#allocation4], 1
    %s1319 = scalar_lea.sflag [#allocation4], 1
    %1320 = vsyncpa %s1319, 1

</llo_original>
